<compile_context>
chip_gen: v5e
topology: v5e:2x2
jax: 0.10.0
libtpu: 0.0.40
codegen_flags: <defaults>
</compile_context>

<pallas_src>
import functools

import jax
import jax.numpy as jnp
from jax.experimental import pallas as pl
from jax.experimental.pallas import tpu as pltpu

LANES = 128
TARGET_BLOCK_BYTES = 4 * 1024 * 1024  # streamed bytes per input per grid step
VMEM_LIMIT_BYTES = 32 * 1024 * 1024   # safe on v5e/v6e/v7x; covers 16 MiB bufs


def _dice_kernel(x_ref, t_ref, o_ref, inter_ref, sx_ref, st_ref, *,
                 smooth, tile_rows, sub, total_rows, need_row_mask,
                 bf16_sigmoid):
    step = pl.program_id(0)
    last = pl.num_programs(0) - 1

    @pl.when(step == 0)
    def _():
        inter_ref[...] = jnp.zeros_like(inter_ref)
        sx_ref[...] = jnp.zeros_like(sx_ref)
        st_ref[...] = jnp.zeros_like(st_ref)

    # Inputs arrive in their native dtype (native-width DMA).
    if bf16_sigmoid:
        # bf16 EUP sigmoid (v6e/v7x); accumulate in f32.
        s = jax.nn.sigmoid(x_ref[...]).astype(jnp.float32)
    else:
        s = jax.nn.sigmoid(x_ref[...].astype(jnp.float32))
    t = t_ref[...].astype(jnp.float32)

    def accumulate(s_v, t_v):
        # Pure vreg adds into (sub, 128) accumulators; no per-step XLU reduce.
        inter_ref[...] += (s_v * t_v).reshape(-1, sub, LANES).sum(axis=0)
        sx_ref[...] += s_v.reshape(-1, sub, LANES).sum(axis=0)
        st_ref[...] += t_v.reshape(-1, sub, LANES).sum(axis=0)

    if need_row_mask:
        # Only the final block can contain garbage rows (the wrapper already
        # guarantees lane alignment), so mask only there.
        @pl.when(step != last)
        def _():
            accumulate(s, t)

        @pl.when(step == last)
        def _():
            row = jax.lax.broadcasted_iota(jnp.int32, (tile_rows, LANES), 0)
            valid = (step * tile_rows + row) < total_rows
            accumulate(jnp.where(valid, s, 0.0), jnp.where(valid, t, 0.0))
    else:
        accumulate(s, t)

    @pl.when(step == last)
    def _():
        # Single cross-sublane/lane reduction to scalars, once.
        inter = jnp.sum(inter_ref[...])
        denom = jnp.sum(sx_ref[...]) + jnp.sum(st_ref[...]) + smooth
        dice = (2.0 * inter + smooth) / denom
        o_ref[...] = (1.0 - dice).reshape(1, 1)


def _neg_pad_value(dtype):
    dtype = jnp.dtype(dtype)
    if jnp.issubdtype(dtype, jnp.floating):
        return jnp.finfo(dtype).min   # sigmoid(min) == 0 exactly
    if jnp.issubdtype(dtype, jnp.integer):
        return jnp.iinfo(dtype).min
    return 0


@functools.partial(jax.jit, static_argnames=("smooth",))
def dice_loss(inputs, targets, smooth=1.0):
    x = inputs.reshape(-1)
    t = targets.reshape(-1)
    n = x.shape[0]

    # Minimal padding (at most LANES-1 elements) so the flat vector can be
    # viewed as (rows, 128).  Skipped entirely when already lane-aligned.
    # x is padded with a huge negative value (sigmoid -> 0), t with 0, so the
    # padded lanes contribute exactly nothing and need no in-kernel masking.
    rem = n % LANES
    if rem:
        pad = LANES - rem
        x = jnp.pad(x, (0, pad), constant_values=_neg_pad_value(x.dtype))
        t = jnp.pad(t, (0, pad), constant_values=0)
    rows = x.shape[0] // LANES
    x2 = x.reshape(rows, LANES)
    t2 = t.reshape(rows, LANES)

    # Dtype-aware block sizing: ~4 MiB streamed per input per step.
    itemsize = max(x.dtype.itemsize, t.dtype.itemsize)
    max_rows = TARGET_BLOCK_BYTES // (LANES * itemsize)
    max_rows = max(32, (max_rows // 32) * 32)  # multiple of 32: valid for all dtypes

    if rows <= max_rows:
        # Single block equal to the full array extent (always a legal block
        # shape, regardless of divisibility).
        tile_rows = rows
        num_tiles = 1
    else:
        tile_rows = max_rows
        num_tiles = pl.cdiv(rows, tile_rows)

    # Only the final block can be ragged (row granularity).
    need_row_mask = (num_tiles * tile_rows) != rows
    sub = 8 if tile_rows % 8 == 0 else 1
    bf16_sigmoid = (x.dtype == jnp.bfloat16)

    kernel = functools.partial(
        _dice_kernel,
        smooth=float(smooth),
        tile_rows=tile_rows,
        sub=sub,
        total_rows=rows,
        need_row_mask=need_row_mask,
        bf16_sigmoid=bf16_sigmoid,
    )

    bytes_accessed = rows * LANES * (x.dtype.itemsize + t.dtype.itemsize) + 4
    cost = pl.CostEstimate(
        flops=5 * n,            # mul + 3 accumulating adds + misc per element
        transcendentals=n,      # one sigmoid per element
        bytes_accessed=int(bytes_accessed),
    )

    out = pl.pallas_call(
        kernel,
        out_shape=jax.ShapeDtypeStruct((1, 1), jnp.float32),
        grid=(num_tiles,),
        in_specs=[
            pl.BlockSpec((tile_rows, LANES), lambda i: (i, 0)),
            pl.BlockSpec((tile_rows, LANES), lambda i: (i, 0)),
        ],
        out_specs=pl.BlockSpec((1, 1), lambda i: (0, 0)),
        scratch_shapes=[
            pltpu.VMEM((sub, LANES), jnp.float32),  # intersection partials
            pltpu.VMEM((sub, LANES), jnp.float32),  # sum(sigmoid(x)) partials
            pltpu.VMEM((sub, LANES), jnp.float32),  # sum(t) partials
        ],
        compiler_params=pltpu.CompilerParams(
            # Single reduction axis across the grid -> accumulator output.
            dimension_semantics=("arbitrary",),
            vmem_limit_bytes=VMEM_LIMIT_BYTES,
        ),
        cost_estimate=cost,
    )(x2, t2)
    return out[0, 0]


def _reference(inputs, targets, smooth=1.0):
    s = jax.nn.sigmoid(inputs.reshape(-1).astype(jnp.float32))
    t = targets.reshape(-1).astype(jnp.float32)
    inter = jnp.sum(s * t)
    dice = (2.0 * inter + smooth) / (jnp.sum(s) + jnp.sum(t) + smooth)
    return 1.0 - dice


if __name__ == "__main__":
    key = jax.random.PRNGKey(0)
    k1, k2 = jax.random.split(key)
    # Small segmentation-style shapes: (B, C, H, W)
    inputs = jax.random.normal(k1, (2, 4, 16, 16), dtype=jnp.float32)
    targets = (jax.random.uniform(k2, (2, 4, 16, 16)) > 0.5).astype(jnp.float32)

    loss = dice_loss(inputs, targets, smooth=1.0)
    jax.block_until_ready(loss)

    ref = _reference(inputs, targets, smooth=1.0)
    assert jnp.allclose(loss, ref, atol=1e-5, rtol=1e-5), (loss, ref)
    print("KERNEL_OK")
</pallas_src>

<mosaic_0001>
module attributes {stable_mosaic.version = 11 : i64} {
  func.func @_dice_kernel(%arg0: i32, %arg1: memref<16x128xf32, #tpu.memory_space<vmem>>, %arg2: memref<16x128xf32, #tpu.memory_space<vmem>>, %arg3: memref<1x1xf32, #tpu.memory_space<vmem>>, %arg4: memref<8x128xf32, #tpu.memory_space<vmem>>, %arg5: memref<8x128xf32, #tpu.memory_space<vmem>>, %arg6: memref<8x128xf32, #tpu.memory_space<vmem>>) attributes {dimension_semantics = [#tpu.dimension_semantics<arbitrary>], iteration_bounds = array<i64: 1>, scalar_prefetch = 0 : i64, scratch_operands = 3 : i64, tpu.core_type = #tpu.core_type<tc>, window_params = [{transform_indices = @transform_0, window_bounds = array<i64: 16, 128>}, {transform_indices = @transform_1, window_bounds = array<i64: 16, 128>}, {pipeline_mode = #tpu.pipeline_mode<synchronous>, transform_indices = @transform_2, window_bounds = array<i64: 1, 1>}]} {
    %c0_i32 = arith.constant 0 : i32
    %0 = arith.cmpi eq, %arg0, %c0_i32 : i32
    %1 = arith.extui %0 : i1 to i32
    %c0_i32_0 = arith.constant 0 : i32
    %2 = arith.cmpi ne, %1, %c0_i32_0 : i32
    scf.if %2 {
      %cst_21 = arith.constant 0.000000e+00 : f32
      %29 = vector.broadcast %cst_21 : f32 to vector<8x128xf32>
      %c0_22 = arith.constant 0 : index
      %c0_23 = arith.constant 0 : index
      %30 = vector.load %arg4[%c0_22, %c0_23] : memref<8x128xf32, #tpu.memory_space<vmem>>, vector<8x128xf32>
      tpu.vector_store %arg4[%c0_22, %c0_23], %29 {strides = array<i32>} : memref<8x128xf32, #tpu.memory_space<vmem>>, vector<8x128xf32>,
      %cst_24 = arith.constant 0.000000e+00 : f32
      %31 = vector.broadcast %cst_24 : f32 to vector<8x128xf32>
      %c0_25 = arith.constant 0 : index
      %c0_26 = arith.constant 0 : index
      %32 = vector.load %arg5[%c0_25, %c0_26] : memref<8x128xf32, #tpu.memory_space<vmem>>, vector<8x128xf32>
      tpu.vector_store %arg5[%c0_25, %c0_26], %31 {strides = array<i32>} : memref<8x128xf32, #tpu.memory_space<vmem>>, vector<8x128xf32>,
      %cst_27 = arith.constant 0.000000e+00 : f32
      %33 = vector.broadcast %cst_27 : f32 to vector<8x128xf32>
      %c0_28 = arith.constant 0 : index
      %c0_29 = arith.constant 0 : index
      %34 = vector.load %arg6[%c0_28, %c0_29] : memref<8x128xf32, #tpu.memory_space<vmem>>, vector<8x128xf32>
      tpu.vector_store %arg6[%c0_28, %c0_29], %33 {strides = array<i32>} : memref<8x128xf32, #tpu.memory_space<vmem>>, vector<8x128xf32>,
    } else {
    }
    %c0 = arith.constant 0 : index
    %c0_1 = arith.constant 0 : index
    %3 = vector.load %arg1[%c0, %c0_1] : memref<16x128xf32, #tpu.memory_space<vmem>>, vector<16x128xf32>
    %4 = arith.negf %3 : vector<16x128xf32>
    %5 = math.exp %4 : vector<16x128xf32>
    %cst = arith.constant 1.000000e+00 : f32
    %6 = vector.broadcast %cst : f32 to vector<16x128xf32>
    %7 = arith.addf %6, %5 : vector<16x128xf32>
    %8 = arith.divf %6, %7 : vector<16x128xf32>
    %c0_2 = arith.constant 0 : index
    %c0_3 = arith.constant 0 : index
    %9 = vector.load %arg2[%c0_2, %c0_3] : memref<16x128xf32, #tpu.memory_space<vmem>>, vector<16x128xf32>
    %c0_4 = arith.constant 0 : index
    %c0_5 = arith.constant 0 : index
    %10 = vector.load %arg4[%c0_4, %c0_5] : memref<8x128xf32, #tpu.memory_space<vmem>>, vector<8x128xf32>
    %11 = arith.mulf %8, %9 : vector<16x128xf32>
    %12 = vector.shape_cast %11 : vector<16x128xf32> to vector<2x8x128xf32>
    %cst_6 = arith.constant dense<0.000000e+00> : vector<8x128xf32>
    %13 = vector.multi_reduction <add>, %12, %cst_6 [0] : vector<2x8x128xf32> to vector<8x128xf32>
    %14 = arith.addf %10, %13 : vector<8x128xf32>
    %c0_7 = arith.constant 0 : index
    %c0_8 = arith.constant 0 : index
    %15 = vector.load %arg4[%c0_7, %c0_8] : memref<8x128xf32, #tpu.memory_space<vmem>>, vector<8x128xf32>
    tpu.vector_store %arg4[%c0_7, %c0_8], %14 {strides = array<i32>} : memref<8x128xf32, #tpu.memory_space<vmem>>, vector<8x128xf32>,
    %c0_9 = arith.constant 0 : index
    %c0_10 = arith.constant 0 : index
    %16 = vector.load %arg5[%c0_9, %c0_10] : memref<8x128xf32, #tpu.memory_space<vmem>>, vector<8x128xf32>
    %17 = vector.shape_cast %8 : vector<16x128xf32> to vector<2x8x128xf32>
    %cst_11 = arith.constant dense<0.000000e+00> : vector<8x128xf32>
    %18 = vector.multi_reduction <add>, %17, %cst_11 [0] : vector<2x8x128xf32> to vector<8x128xf32>
    %19 = arith.addf %16, %18 : vector<8x128xf32>
    %c0_12 = arith.constant 0 : index
    %c0_13 = arith.constant 0 : index
    %20 = vector.load %arg5[%c0_12, %c0_13] : memref<8x128xf32, #tpu.memory_space<vmem>>, vector<8x128xf32>
    tpu.vector_store %arg5[%c0_12, %c0_13], %19 {strides = array<i32>} : memref<8x128xf32, #tpu.memory_space<vmem>>, vector<8x128xf32>,
    %c0_14 = arith.constant 0 : index
    %c0_15 = arith.constant 0 : index
    %21 = vector.load %arg6[%c0_14, %c0_15] : memref<8x128xf32, #tpu.memory_space<vmem>>, vector<8x128xf32>
    %22 = vector.shape_cast %9 : vector<16x128xf32> to vector<2x8x128xf32>
    %cst_16 = arith.constant dense<0.000000e+00> : vector<8x128xf32>
    %23 = vector.multi_reduction <add>, %22, %cst_16 [0] : vector<2x8x128xf32> to vector<8x128xf32>
    %24 = arith.addf %21, %23 : vector<8x128xf32>
    %c0_17 = arith.constant 0 : index
    %c0_18 = arith.constant 0 : index
    %25 = vector.load %arg6[%c0_17, %c0_18] : memref<8x128xf32, #tpu.memory_space<vmem>>, vector<8x128xf32>
    tpu.vector_store %arg6[%c0_17, %c0_18], %24 {strides = array<i32>} : memref<8x128xf32, #tpu.memory_space<vmem>>, vector<8x128xf32>,
    %c0_i32_19 = arith.constant 0 : i32
    %26 = arith.cmpi eq, %arg0, %c0_i32_19 : i32
    %27 = arith.extui %26 : i1 to i32
    %c0_i32_20 = arith.constant 0 : i32
    %28 = arith.cmpi ne, %27, %c0_i32_20 : i32
    scf.if %28 {
      %c0_21 = arith.constant 0 : index
      %c0_22 = arith.constant 0 : index
      %29 = vector.load %arg4[%c0_21, %c0_22] : memref<8x128xf32, #tpu.memory_space<vmem>>, vector<8x128xf32>
      %30 = vector.shape_cast %29 : vector<8x128xf32> to vector<1x8x128xf32>
      %cst_23 = arith.constant dense<0.000000e+00> : vector<1xf32>
      %31 = vector.multi_reduction <add>, %30, %cst_23 [1, 2] : vector<1x8x128xf32> to vector<1xf32>
      %32 = vector.shape_cast %31 : vector<1xf32> to vector<1x1x1xf32>
      %33 = vector.extract %32[0, 0, 0] : f32 from vector<1x1x1xf32>
      %c0_24 = arith.constant 0 : index
      %c0_25 = arith.constant 0 : index
      %34 = vector.load %arg5[%c0_24, %c0_25] : memref<8x128xf32, #tpu.memory_space<vmem>>, vector<8x128xf32>
      %35 = vector.shape_cast %34 : vector<8x128xf32> to vector<1x8x128xf32>
      %cst_26 = arith.constant dense<0.000000e+00> : vector<1xf32>
      %36 = vector.multi_reduction <add>, %35, %cst_26 [1, 2] : vector<1x8x128xf32> to vector<1xf32>
      %37 = vector.shape_cast %36 : vector<1xf32> to vector<1x1x1xf32>
      %38 = vector.extract %37[0, 0, 0] : f32 from vector<1x1x1xf32>
      %c0_27 = arith.constant 0 : index
      %c0_28 = arith.constant 0 : index
      %39 = vector.load %arg6[%c0_27, %c0_28] : memref<8x128xf32, #tpu.memory_space<vmem>>, vector<8x128xf32>
      %40 = vector.shape_cast %39 : vector<8x128xf32> to vector<1x8x128xf32>
      %cst_29 = arith.constant dense<0.000000e+00> : vector<1xf32>
      %41 = vector.multi_reduction <add>, %40, %cst_29 [1, 2] : vector<1x8x128xf32> to vector<1xf32>
      %42 = vector.shape_cast %41 : vector<1xf32> to vector<1x1x1xf32>
      %43 = vector.extract %42[0, 0, 0] : f32 from vector<1x1x1xf32>
      %44 = arith.addf %38, %43 : f32
      %cst_30 = arith.constant 1.000000e+00 : f32
      %45 = arith.addf %44, %cst_30 : f32
      %cst_31 = arith.constant 2.000000e+00 : f32
      %46 = arith.mulf %cst_31, %33 : f32
      %cst_32 = arith.constant 1.000000e+00 : f32
      %47 = arith.addf %46, %cst_32 : f32
      %48 = arith.divf %47, %45 : f32
      %cst_33 = arith.constant 1.000000e+00 : f32
      %49 = arith.subf %cst_33, %48 : f32
      %50 = vector.broadcast %49 : f32 to vector<1x1xf32>
      %c0_34 = arith.constant 0 : index
      %c0_35 = arith.constant 0 : index
      %51 = vector.load %arg3[%c0_34, %c0_35] : memref<1x1xf32, #tpu.memory_space<vmem>>, vector<1x1xf32>
      tpu.vector_store %arg3[%c0_34, %c0_35], %50 {strides = array<i32>} : memref<1x1xf32, #tpu.memory_space<vmem>>, vector<1x1xf32>,
    } else {
    }
    return
  }
  func.func @transform_0(%arg0: i32) -> (i32, i32) {
    %c0_i32 = arith.constant 0 : i32
    %c0_i32_0 = arith.constant 0 : i32
    return %arg0, %c0_i32 : i32, i32
  }
  func.func @transform_1(%arg0: i32) -> (i32, i32) {
    %c0_i32 = arith.constant 0 : i32
    %c0_i32_0 = arith.constant 0 : i32
    return %arg0, %c0_i32 : i32, i32
  }
  func.func @transform_2(%arg0: i32) -> (i32, i32) {
    %c0_i32 = arith.constant 0 : i32
    %c0_i32_0 = arith.constant 0 : i32
    %c0_i32_1 = arith.constant 0 : i32
    return %c0_i32, %c0_i32_0 : i32, i32
  }
}

</mosaic_0001>

<llo_original>
// kernel: dice_loss.1
$region0: #{dice_loss.1}
  #allocation0 [shape = 'u32[]', space=smem, size = 0x4, offset = 0x4, fixed_abs, tag = 'smem constant byte address 0x4 - core index']
  #allocation1 [shape = 'u32[72,128]{1,0:T(1,128)}', space=vmem, size = 0x9000, scoped, tag = 'internal scratch']
  #allocation2 [shape = 'f32[8,128]{1,0:T(8,128)}', space=vmem, size = 0x1000, scoped, tag = 'scratch operand']
  #allocation3 [shape = 'f32[8,128]{1,0:T(8,128)}', space=vmem, size = 0x1000, scoped, tag = 'scratch operand']
  #allocation4 [shape = 'f32[8,128]{1,0:T(8,128)}', space=vmem, size = 0x1000, scoped, tag = 'scratch operand']
  %s0 = inlined_call_operand.vmem [shape: f32[16,128], index: 0, kind: input, shape index: {}]
  %s1 = inlined_call_operand.vmem [shape: f32[16,128], index: 1, kind: input, shape index: {}]
  %s2 = inlined_call_operand.hbm [shape: f32[1,1], index: 2, kind: output, shape index: {}]
  %s3 = sld [smem:[#allocation0]]
  $region26: #{dice_loss.1} parent=0
    _
  %s5 = ssub.s32 1, %s3
  %s6 = scalar_select 0, %s5, %s3
  $region1: #{dice_loss.1} parent=0
    #allocation5 [shape = 'u8[512]{0}', space=vmem, size = 0x400, scoped, tag = 'output window, operand 0, single buffered']
    #allocation6 [shape = 's32[1]{0}', space=sflag, size = 0x4, scoped, tag = 'scoped memory for dice_loss.1']
    %7 = vsyncpa [#allocation6], 0
    // Predicated region
    $region2: #{dice_loss.1} parent=1 // pred_check
      _
    $region3: #{dice_loss.1} parent=1 // pred_check_branch
      %9 = sbr.rel (0) target = $region5
    $region4: #{dice_loss.1} parent=1 // pred_region
      _
    $region5: #{dice_loss.1} parent=1 // pred_fallthru
      _
    // Predicated region
    $region6: #{dice_loss.1} parent=1 // pred_check
      _
    $region7: #{dice_loss.1} parent=1 // pred_check_branch
      %11 = sbr.rel (0) target = $region9
    $region8: #{dice_loss.1} parent=1 // pred_region
      _
    $region9: #{dice_loss.1} parent=1 // pred_fallthru
      _
    %p12 = scmp.eq.s32.totalorder 0, 0
    // Predicated region
    $region10: #{dice_loss.1} parent=1 // pred_check
      %p13 = pneg %p12
    $region11: #{dice_loss.1} parent=1 // pred_check_branch
      %15 = sbr.rel (%p13) target = $region13
    $region12: #{dice_loss.1} parent=1 // pred_region
      %16 = vst [vmem:[#allocation2] sm:$0xff] 0.0
      %17 = vst [vmem:[#allocation3] sm:$0xff] 0.0
      %18 = vst [vmem:[#allocation4] sm:$0xff] 0.0
    $region13: #{dice_loss.1} parent=1 // pred_fallthru
      _
    %v19 = vld [vmem:[%s0] sm:$0xff]
    %v20 = vld [vmem:[%s0 + $0x8] sm:$0xff]
    %v21 = vxor.u32 %v19, 2147483648
    %v22 = vxor.u32 %v20, 2147483648
    %v23 = vmul.f32 %v21, 1.442695
    %v24 = vpow.pop %v23
    %v25 = vmul.f32 %v22, 1.442695
    %v26 = vpow.pop %v25
    %v27 = vadd.f32 %v24, 1.0
    %v28 = vadd.f32 %v26, 1.0
    %v29 = vrcp.pop %v27
    %v30 = vmul.f32 %v27, %v29
    %v31 = vsub.f32 1.0, %v30
    %v32 = vmul.f32 %v29, %v31
    %v33 = vadd.f32 %v29, %v32
    %vm34 = vweird.f32 %v27
    %vm35 = vweird.f32 %v29
    %vm36 = vmor %vm34, %vm35
    %v37 = vsel %vm36, %v29, %v33
    %v38 = vand.u32 2147483647, %v27
    %vm39 = vcmp.eq.f32.partialorder %v38, 8.507059e+37
    %v40 = vand.u32 %v27, 2147483648
    %v41 = vor.u32 1.1754944e-38, %v40
    %v42 = vsel %vm39, %v41, %v37
    %v43 = vmul.f32 1.0, %v42
    %v44 = vrcp.pop %v28
    %v45 = vmul.f32 %v28, %v44
    %v46 = vsub.f32 1.0, %v45
    %v47 = vmul.f32 %v44, %v46
    %v48 = vadd.f32 %v44, %v47
    %vm49 = vweird.f32 %v28
    %vm50 = vweird.f32 %v44
    %vm51 = vmor %vm49, %vm50
    %v52 = vsel %vm51, %v44, %v48
    %v53 = vand.u32 2147483647, %v28
    %vm54 = vcmp.eq.f32.partialorder %v53, 8.507059e+37
    %v55 = vand.u32 %v28, 2147483648
    %v56 = vor.u32 1.1754944e-38, %v55
    %v57 = vsel %vm54, %v56, %v52
    %v58 = vmul.f32 1.0, %v57
    %v59 = vld [vmem:[%s1] sm:$0xff]
    %v60 = vld [vmem:[%s1 + $0x8] sm:$0xff]
    %v61 = vld [vmem:[#allocation2] sm:$0xff]
    %v62 = vmul.f32 %v43, %v59
    %v63 = vmul.f32 %v58, %v60
    %v64 = vadd.f32 %v62, %v63
    %v65 = vadd.f32 %v61, %v64
    %66 = vst [vmem:[#allocation2] sm:$0xff] %v65
    %v67 = vld [vmem:[#allocation3] sm:$0xff]
    %v68 = vadd.f32 %v43, %v58
    %v69 = vadd.f32 %v67, %v68
    %70 = vst [vmem:[#allocation3] sm:$0xff] %v69
    %v71 = vld [vmem:[#allocation4] sm:$0xff]
    %v72 = vadd.f32 %v59, %v60
    %v73 = vadd.f32 %v71, %v72
    %74 = vst [vmem:[#allocation4] sm:$0xff] %v73
    // Predicated region
    $region14: #{dice_loss.1} parent=1 // pred_check
      %p75 = pneg %p12
    $region15: #{dice_loss.1} parent=1 // pred_check_branch
      %77 = sbr.rel (%p75) target = $region17
    $region16: #{dice_loss.1} parent=1 // pred_region
      %v78 = vld [vmem:[#allocation2] sm:$0xff]
      %79 = vadd.xlane.f32.xlu0 %v78
      %v80 = vpop.xlane.xlu0 %79
      %v81 = vrot.slane %v80, 4
      %v82 = vadd.f32 %v80, %v81
      %v83 = vrot.slane %v82, 2
      %v84 = vadd.f32 %v82, %v83
      %v85 = vrot.slane %v84, 1
      %v86 = vadd.f32 %v84, %v85
      %s87 = vtos %v86
      %v88 = vld [vmem:[#allocation3] sm:$0xff]
      %89 = vadd.xlane.f32.xlu0 %v88
      %v90 = vpop.xlane.xlu0 %89
      %v91 = vrot.slane %v90, 4
      %v92 = vadd.f32 %v90, %v91
      %v93 = vrot.slane %v92, 2
      %v94 = vadd.f32 %v92, %v93
      %v95 = vrot.slane %v94, 1
      %v96 = vadd.f32 %v94, %v95
      %s97 = vtos %v96
      %v98 = vld [vmem:[#allocation4] sm:$0xff]
      %99 = vadd.xlane.f32.xlu0 %v98
      %v100 = vpop.xlane.xlu0 %99
      %v101 = vrot.slane %v100, 4
      %v102 = vadd.f32 %v100, %v101
      %v103 = vrot.slane %v102, 2
      %v104 = vadd.f32 %v102, %v103
      %v105 = vrot.slane %v104, 1
      %v106 = vadd.f32 %v104, %v105
      %s107 = vtos %v106
      %s108 = sadd.f32 %s97, %s107
      %s109 = sadd.f32 %s108, 1.0
      %s110 = smul.f32 %s87, 2.0
      %s111 = sadd.f32 %s110, 1.0
      %v112 = vstv %s109
      %v113 = vrcp.pop %v112
      %v114 = vmul.f32 %v112, %v113
      %v115 = vsub.f32 1.0, %v114
      %v116 = vmul.f32 %v113, %v115
      %v117 = vadd.f32 %v113, %v116
      %vm118 = vweird.f32 %v112
      %vm119 = vweird.f32 %v113
      %vm120 = vmor %vm118, %vm119
      %v121 = vsel %vm120, %v113, %v117
      %v122 = vand.u32 2147483647, %v112
      %vm123 = vcmp.eq.f32.partialorder %v122, 8.507059e+37
      %v124 = vand.u32 %v112, 2147483648
      %v125 = vor.u32 1.1754944e-38, %v124
      %v126 = vsel %vm123, %v125, %v121
      %s127 = vtos %v126
      %s128 = smul.f32 %s111, %s127
      %s129 = ssub.f32 1.0, %s128
      %v130 = vstv %s129
      %vm131 = vcmask 0
      %132 = vst.msk [vmem:[#allocation5] sm:$0x1] %vm131, %v130
    $region17: #{dice_loss.1} parent=1 // pred_fallthru
      _
    // Predicated region
    $region18: #{dice_loss.1} parent=1 // pred_check
      _
    $region19: #{dice_loss.1} parent=1 // pred_check_branch
      %134 = sbr.rel (0) target = $region21
    $region20: #{dice_loss.1} parent=1 // pred_region
      %136 = vsyncadd [#allocation6], 0
      %s138 = sshll.u32 [#allocation5], 4
      %s139 = int_to_ptr.vmem [resolvable:$true] %s138
      %s140 = sshll.u32 %s2, 4
      %s141 = int_to_ptr.hbm [resolvable:$true] %s140
      %143 = dma.vmem_to_hbm [thread:$0]  %s139, 16, %s141, [#allocation6]
    $region21: #{dice_loss.1} parent=1 // pred_fallthru
      _
    // Predicated region
    $region22: #{dice_loss.1} parent=1 // pred_check
      _
    $region23: #{dice_loss.1} parent=1 // pred_check_branch
      %145 = sbr.rel (0) target = $region25
    $region24: #{dice_loss.1} parent=1 // pred_region
      %147 = dma.done [#allocation6], 16
    $region25: #{dice_loss.1} parent=1 // pred_fallthru
      _
    %148 = vsyncpa [#allocation6], 1

</llo_original>
